<compile_context>
chip_gen: v7x
topology: tpu7x:2x2x1
jax: 0.10.0
libtpu: 0.0.40
codegen_flags: <defaults>
</compile_context>

<pallas_src>
import functools
import math

import jax
import jax.numpy as jnp
from jax.experimental import pallas as pl
from jax.experimental.pallas import tpu as pltpu

_EPS = 1e-8                      # PyTorch CosineSimilarity default eps
_VMEM_LIMIT = 48 * 1024 * 1024   # > 16/32 MiB scoped defaults, < 64 MiB (v7x)
_PER_BLOCK_BYTES = 6 * 1024 * 1024     # per-input block budget (matmul path)
_ROWS_VMEM_BUDGET = 24 * 1024 * 1024   # double-buffered input budget (rows path)

_CONTRACT_LAST = (((1,), (1,)), ((), ()))   # dot_general: contract last dims


# ---------------------------------------------------------------------------
# Kernels
# ---------------------------------------------------------------------------
def _cos_matmul_kernel(x_ref, y_ref, o_ref, *, inv_temp):
    """One (tmi, tmj) block of the all-pairs cosine-similarity matrix."""
    x = x_ref[...]                             # (tmi, D), native dtype
    y = y_ref[...]                             # (tmj, D), native dtype

    # Raw dot products on the MXU in the input dtype, f32 accumulate.
    dots = jax.lax.dot_general(x, y, _CONTRACT_LAST,
                               preferred_element_type=jnp.float32)  # (tmi, tmj)

    xf = x.astype(jnp.float32)
    yf = y.astype(jnp.float32)
    # Per-row squared norms of x: (tmi, 1) (sublane layout matches `dots` rows).
    nx2 = jnp.sum(xf * xf, axis=-1, keepdims=True)
    # Per-row squared norms of y in lane layout (1, tmj); computed via a tiny
    # ones-row matmul so no cross-lane relayout is needed.
    ones = jnp.ones((1, y.shape[-1]), dtype=jnp.float32)
    ny2_t = jax.lax.dot_general(ones, yf * yf, _CONTRACT_LAST,
                                preferred_element_type=jnp.float32)  # (1, tmj)

    # cos = x.y / max(||x||*||y||, eps)  ==  x.y * rsqrt(max(|x|^2|y|^2, eps^2))
    denom2 = jnp.maximum(nx2 * ny2_t, _EPS * _EPS)
    o_ref[...] = (dots * jax.lax.rsqrt(denom2) * inv_temp).astype(o_ref.dtype)


def _cos_rows_kernel(x_ref, y_ref, o_ref, *, inv_temp):
    """Row-matched cosine similarity for (tm, D) tiles -> lane-dense (1,1,tm)."""
    x = x_ref[...].astype(jnp.float32)         # (tm, D)
    y = y_ref[...].astype(jnp.float32)

    # ones-row matmuls: reduction over D done on the MXU AND the result comes
    # out in lane layout (1, tm), so the output store is unmasked/lane-dense.
    ones = jnp.ones((1, x.shape[-1]), dtype=jnp.float32)
    dot = jax.lax.dot_general(ones, x * y, _CONTRACT_LAST,
                              preferred_element_type=jnp.float32)   # (1, tm)
    nx2 = jax.lax.dot_general(ones, x * x, _CONTRACT_LAST,
                              preferred_element_type=jnp.float32)   # (1, tm)
    ny2 = jax.lax.dot_general(ones, y * y, _CONTRACT_LAST,
                              preferred_element_type=jnp.float32)   # (1, tm)

    denom2 = jnp.maximum(nx2 * ny2, _EPS * _EPS)
    res = dot * jax.lax.rsqrt(denom2) * inv_temp                    # (1, tm)
    o_ref[...] = res[None].astype(o_ref.dtype)                      # (1, 1, tm)


# ---------------------------------------------------------------------------
# Tile selection
# ---------------------------------------------------------------------------
def _pick_row_tile(m, d, max_rows=512):
    cap = (_PER_BLOCK_BYTES // (4 * d)) // 8 * 8
    cap = max(8, min(max_rows, cap))
    return m if m <= cap else cap          # full dim or multiple of 8


def _pick_col_tile(n, d, max_cols=512):
    cap = (_PER_BLOCK_BYTES // (4 * d)) // 128 * 128
    cap = max(128, min(max_cols, cap))
    return n if n <= cap else cap          # full dim or multiple of 128


def _pick_rows_path_tile(n_rows, d):
    # Single block (grid of 1) whenever it fits comfortably: full dims are
    # always layout-legal and per-step overhead disappears.
    if 16 * n_rows * d <= _ROWS_VMEM_BUDGET and n_rows <= 4096:
        return n_rows
    cap128 = (_ROWS_VMEM_BUDGET // (16 * d)) // 128 * 128   # 2 in x 2 buf x 4B
    if cap128 >= 128:
        return min(4096, cap128)           # lane-dense multiple of 128
    # Huge D: fall back to a multiple-of-8 row tile to respect the budget.
    return max(8, (_ROWS_VMEM_BUDGET // (16 * d)) // 8 * 8)


# ---------------------------------------------------------------------------
# pallas_call wrappers
# ---------------------------------------------------------------------------
def _cos_matrix(x2, y2, inv_temp, out_dtype):
    """All-pairs cosine similarity (M, D) x (N, D) -> (M, N), scaled."""
    M, D = x2.shape
    N = y2.shape[0]
    tmi = _pick_row_tile(M, D)
    tmj = _pick_col_tile(N, D)

    kernel = functools.partial(_cos_matmul_kernel, inv_temp=inv_temp)
    return pl.pallas_call(
        kernel,
        out_shape=jax.ShapeDtypeStruct((M, N), out_dtype),
        grid_spec=pltpu.PrefetchScalarGridSpec(
            num_scalar_prefetch=0,
            grid=(pl.cdiv(M, tmi), pl.cdiv(N, tmj)),
            in_specs=[
                pl.BlockSpec((tmi, D), lambda i, j: (i, 0)),
                pl.BlockSpec((tmj, D), lambda i, j: (j, 0)),
            ],
            out_specs=pl.BlockSpec((tmi, tmj), lambda i, j: (i, j)),
        ),
        compiler_params=pltpu.CompilerParams(
            dimension_semantics=("parallel", "parallel"),
            vmem_limit_bytes=_VMEM_LIMIT,
        ),
    )(x2, y2)


def _cos_rows(xb, yb, inv_temp, out_dtype):
    """Row-matched cosine similarity over (N, D) -> (N,)."""
    n_rows, D = xb.shape
    tm = _pick_rows_path_tile(n_rows, D)
    num_tiles = -(-n_rows // tm)

    # TODO(synk): for D < 128 fold several rows into the lane axis (segmented
    # reduction) to improve lane utilization of the input loads.
    kernel = functools.partial(_cos_rows_kernel, inv_temp=inv_temp)
    out = pl.pallas_call(
        kernel,
        out_shape=jax.ShapeDtypeStruct((num_tiles, 1, tm), out_dtype),
        grid_spec=pltpu.PrefetchScalarGridSpec(
            num_scalar_prefetch=0,
            grid=(num_tiles,),                 # no jnp.pad; ragged last block
            in_specs=[
                pl.BlockSpec((tm, D), lambda i: (i, 0)),
                pl.BlockSpec((tm, D), lambda i: (i, 0)),
            ],
            out_specs=pl.BlockSpec((1, 1, tm), lambda i: (i, 0, 0)),
        ),
        compiler_params=pltpu.CompilerParams(
            dimension_semantics=("parallel",),
            vmem_limit_bytes=_VMEM_LIMIT,
        ),
    )(xb, yb)
    return out.reshape(-1)[:n_rows]


# ---------------------------------------------------------------------------
# Public entry point (mirrors Similarity(temp).forward(x, y))
# ---------------------------------------------------------------------------
def similarity(x, y, temp):
    full_shape = jnp.broadcast_shapes(x.shape, y.shape)
    D = full_shape[-1]
    nd = len(full_shape)
    out_dtype = jnp.result_type(x.dtype, y.dtype)
    inv_temp = 1.0 / float(temp)

    # Align ndims (prepend 1s) for broadcast-structure analysis.
    xs = (1,) * (nd - x.ndim) + tuple(x.shape)
    ys = (1,) * (nd - y.ndim) + tuple(y.shape)
    lead_x, lead_y = xs[:-1], ys[:-1]

    pure_outer = (
        nd >= 2
        and xs[-1] == D
        and ys[-1] == D
        and all(a == 1 or b == 1 for a, b in zip(lead_x, lead_y))
    )

    if pure_outer:
        # --- MXU path: no broadcast materialization ---
        M = math.prod(lead_x) if lead_x else 1
        N = math.prod(lead_y) if lead_y else 1
        x2 = x.reshape(M, D)
        y2 = y.reshape(N, D)
        s = _cos_matrix(x2, y2, inv_temp, out_dtype)          # (M, N)

        # Rearrange (M, N) into the broadcast output shape (metadata only).
        nlead = nd - 1
        s_full = s.reshape(lead_x + lead_y)
        axes_main = [i if lead_x[i] > 1 else nlead + i for i in range(nlead)]
        axes_rest = [a for a in range(2 * nlead) if a not in axes_main]
        return jnp.transpose(s_full, axes_main + axes_rest).reshape(
            full_shape[:-1]
        )

    # --- generic element-wise path ---
    xb = jnp.broadcast_to(x, full_shape).reshape(-1, D)
    yb = jnp.broadcast_to(y, full_shape).reshape(-1, D)
    flat = _cos_rows(xb, yb, inv_temp, out_dtype)
    return flat.reshape(full_shape[:-1])


# ---------------------------------------------------------------------------
# Pure-JAX reference & self-test
# ---------------------------------------------------------------------------
def _reference(x, y, temp):
    full_shape = jnp.broadcast_shapes(x.shape, y.shape)
    xb = jnp.broadcast_to(x, full_shape).astype(jnp.float32)
    yb = jnp.broadcast_to(y, full_shape).astype(jnp.float32)
    dot = jnp.sum(xb * yb, axis=-1)
    nx = jnp.sqrt(jnp.sum(xb * xb, axis=-1))
    ny = jnp.sqrt(jnp.sum(yb * yb, axis=-1))
    return dot / jnp.maximum(nx * ny, _EPS) / temp


if __name__ == "__main__":
    key = jax.random.PRNGKey(0)
    k1, k2 = jax.random.split(key)

    B, H = 8, 32
    temp = 0.05  # SimCSE-style temperature

    # SimCSE-style usage: x (B, 1, H) vs y (1, B, H) -> (B, B) similarity grid
    x = jax.random.normal(k1, (B, 1, H), dtype=jnp.float32)
    y = jax.random.normal(k2, (1, B, H), dtype=jnp.float32)

    out = jax.block_until_ready(similarity(x, y, temp))
    ref = _reference(x, y, temp)
    assert out.shape == (B, B), out.shape
    assert jnp.allclose(out, ref, atol=1e-4, rtol=1e-4), (
        float(jnp.max(jnp.abs(out - ref)))
    )

    # Also exercise the generic element-wise (row-matched) path.
    x2 = jax.random.normal(k1, (4, 8, H), dtype=jnp.float32)
    y2 = jax.random.normal(k2, (4, 8, H), dtype=jnp.float32)
    out2 = jax.block_until_ready(similarity(x2, y2, temp))
    ref2 = _reference(x2, y2, temp)
    assert out2.shape == (4, 8), out2.shape
    assert jnp.allclose(out2, ref2, atol=1e-4, rtol=1e-4), (
        float(jnp.max(jnp.abs(out2 - ref2)))
    )

    print("KERNEL_OK")
</pallas_src>

<mosaic_0001>
module attributes {stable_mosaic.version = 11 : i64} {
  func.func @_cos_matmul_kernel(%arg0: i32, %arg1: i32, %arg2: memref<8x32xf32, #tpu.memory_space<vmem>>, %arg3: memref<8x32xf32, #tpu.memory_space<vmem>>, %arg4: memref<8x8xf32, #tpu.memory_space<vmem>>) attributes {dimension_semantics = [#tpu.dimension_semantics<parallel>, #tpu.dimension_semantics<parallel>], iteration_bounds = array<i64: 1, 1>, scalar_prefetch = 0 : i64, scratch_operands = 0 : i64, tpu.core_type = #tpu.core_type<tc>, window_params = [{transform_indices = @transform_0, window_bounds = array<i64: 8, 32>}, {transform_indices = @transform_1, window_bounds = array<i64: 8, 32>}, {transform_indices = @transform_2, window_bounds = array<i64: 8, 8>}]} {
    %c0 = arith.constant 0 : index
    %c0_0 = arith.constant 0 : index
    %0 = vector.load %arg2[%c0, %c0_0] : memref<8x32xf32, #tpu.memory_space<vmem>>, vector<8x32xf32>
    %c0_1 = arith.constant 0 : index
    %c0_2 = arith.constant 0 : index
    %1 = vector.load %arg3[%c0_1, %c0_2] : memref<8x32xf32, #tpu.memory_space<vmem>>, vector<8x32xf32>
    %cst = arith.constant dense<0.000000e+00> : vector<8x8xf32>
    %2 = tpu.matmul %0, %1, %cst {dimension_numbers = #tpu.dot_dimension_numbers<[1], [1], [0], [0], [0, 0, 1, 0], [], []>} : vector<8x32xf32>, vector<8x32xf32>, vector<8x8xf32> -> vector<8x8xf32>
    %3 = arith.mulf %0, %0 : vector<8x32xf32>
    %cst_3 = arith.constant dense<0.000000e+00> : vector<8xf32>
    %4 = vector.multi_reduction <add>, %3, %cst_3 [1] : vector<8x32xf32> to vector<8xf32>
    %5 = vector.shape_cast %4 : vector<8xf32> to vector<8x1xf32>
    %cst_4 = arith.constant 1.000000e+00 : f32
    %6 = vector.broadcast %cst_4 : f32 to vector<1x32xf32>
    %7 = arith.mulf %1, %1 : vector<8x32xf32>
    %cst_5 = arith.constant dense<0.000000e+00> : vector<1x8xf32>
    %8 = tpu.matmul %6, %7, %cst_5 {dimension_numbers = #tpu.dot_dimension_numbers<[1], [1], [0], [0], [0, 0, 1, 0], [], []>} : vector<1x32xf32>, vector<8x32xf32>, vector<1x8xf32> -> vector<1x8xf32>
    %9 = vector.broadcast %5 : vector<8x1xf32> to vector<8x8xf32>
    %10 = vector.broadcast %8 : vector<1x8xf32> to vector<8x8xf32>
    %11 = arith.mulf %9, %10 : vector<8x8xf32>
    %cst_6 = arith.constant 1.000000e-16 : f32
    %12 = vector.broadcast %cst_6 : f32 to vector<8x8xf32>
    %13 = arith.maximumf %11, %12 : vector<8x8xf32>
    %14 = math.rsqrt %13 : vector<8x8xf32>
    %15 = arith.mulf %2, %14 : vector<8x8xf32>
    %cst_7 = arith.constant 2.000000e+01 : f32
    %16 = vector.broadcast %cst_7 : f32 to vector<8x8xf32>
    %17 = arith.mulf %15, %16 : vector<8x8xf32>
    %c0_8 = arith.constant 0 : index
    %c0_9 = arith.constant 0 : index
    %18 = vector.load %arg4[%c0_8, %c0_9] : memref<8x8xf32, #tpu.memory_space<vmem>>, vector<8x8xf32>
    tpu.vector_store %arg4[%c0_8, %c0_9], %17 {strides = array<i32>} : memref<8x8xf32, #tpu.memory_space<vmem>>, vector<8x8xf32>,
    return
  }
  func.func @transform_0(%arg0: i32, %arg1: i32) -> (i32, i32) {
    %c0_i32 = arith.constant 0 : i32
    %c0_i32_0 = arith.constant 0 : i32
    return %arg0, %c0_i32 : i32, i32
  }
  func.func @transform_1(%arg0: i32, %arg1: i32) -> (i32, i32) {
    %c0_i32 = arith.constant 0 : i32
    %c0_i32_0 = arith.constant 0 : i32
    return %arg1, %c0_i32 : i32, i32
  }
  func.func @transform_2(%arg0: i32, %arg1: i32) -> (i32, i32) {
    %c0_i32 = arith.constant 0 : i32
    return %arg0, %arg1 : i32, i32
  }
}

</mosaic_0001>

<llo_original>
// kernel: tpu_custom_call.1
$region0: #{tpu_custom_call.1}
  #allocation0 [shape = 'u32[]', space=smem, size = 0x4, offset = 0x4, fixed_abs, tag = 'smem constant byte address 0x4 - core index']
  #allocation1 [shape = 'u32[144,128]{1,0:T(1,128)}', space=vmem, size = 0x12000, scoped, tag = 'internal scratch']
  %s0 = inlined_call_operand.hbm [shape: f32[8,32], index: 0, kind: input, shape index: {}]
  %s1 = inlined_call_operand.hbm [shape: f32[8,32], index: 1, kind: input, shape index: {}]
  %s2 = inlined_call_operand.hbm [shape: f32[8,8], index: 2, kind: output, shape index: {}]
  %s3 = sld [smem:[#allocation0]]
  $region26: #{tpu_custom_call.1} parent=0
    _
  %s5 = ssub.s32 1, %s3
  %s6 = scalar_select 0, %s5, %s3
  $region1: #{tpu_custom_call.1} parent=0
    #allocation2 [shape = 'u8[4096]{0}', space=vmem, size = 0x1000, scoped, tag = 'input window, operand 0, single buffered']
    #allocation3 [shape = 's32[1]{0}', space=sflag, size = 0x4, scoped, tag = 'scoped memory for tpu_custom_call.1']
    #allocation4 [shape = 's32[1]{0}', space=sflag, size = 0x4, scoped, tag = 'scoped memory for tpu_custom_call.1']
    #allocation5 [shape = 'u8[4096]{0}', space=vmem, size = 0x1000, scoped, tag = 'input window, operand 1, single buffered']
    #allocation6 [shape = 's32[1]{0}', space=sflag, size = 0x4, scoped, tag = 'scoped memory for tpu_custom_call.1']
    #allocation7 [shape = 'u8[4096]{0}', space=vmem, size = 0x1000, scoped, tag = 'output window, operand 0, single buffered']
    %7 = vsyncpa [#allocation3], 0
    %8 = vsyncpa [#allocation6], 0
    %9 = vsyncpa [#allocation4], 0
    // Predicated region
    $region2: #{tpu_custom_call.1} parent=1 // pred_check
      _
    $region3: #{tpu_custom_call.1} parent=1 // pred_check_branch
      %11 = sbr.rel (0) target = $region5
    $region4: #{tpu_custom_call.1} parent=1 // pred_region
      %s13 = ssub.s32 128, 128
      %14 = vsyncadd [#allocation3], %s13
      %s16 = sshll.u32 [#allocation2], 4
      %s17 = int_to_ptr.vmem [resolvable:$true] %s16
      %19 = dma.hbm_to_vmem [thread:$0]  %s0, 128, %s17, [#allocation3]
    $region5: #{tpu_custom_call.1} parent=1 // pred_fallthru
      _
    // Predicated region
    $region6: #{tpu_custom_call.1} parent=1 // pred_check
      _
    $region7: #{tpu_custom_call.1} parent=1 // pred_check_branch
      %21 = sbr.rel (0) target = $region9
    $region8: #{tpu_custom_call.1} parent=1 // pred_region
      %s23 = ssub.s32 128, 128
      %24 = vsyncadd [#allocation6], %s23
      %s26 = sshll.u32 [#allocation5], 4
      %s27 = int_to_ptr.vmem [resolvable:$true] %s26
      %29 = dma.hbm_to_vmem [thread:$0]  %s1, 128, %s27, [#allocation6]
    $region9: #{tpu_custom_call.1} parent=1 // pred_fallthru
      _
    // Predicated region
    $region10: #{tpu_custom_call.1} parent=1 // pred_check
      _
    $region11: #{tpu_custom_call.1} parent=1 // pred_check_branch
      %31 = sbr.rel (0) target = $region13
    $region12: #{tpu_custom_call.1} parent=1 // pred_region
      %32 = dma.done [#allocation3], 128
    $region13: #{tpu_custom_call.1} parent=1 // pred_fallthru
      _
    // Predicated region
    $region14: #{tpu_custom_call.1} parent=1 // pred_check
      _
    $region15: #{tpu_custom_call.1} parent=1 // pred_check_branch
      %34 = sbr.rel (0) target = $region17
    $region16: #{tpu_custom_call.1} parent=1 // pred_region
      %35 = dma.done [#allocation6], 128
    $region17: #{tpu_custom_call.1} parent=1 // pred_fallthru
      _
    %v36 = vld [vmem:[#allocation2] sm:$0xff]
    %v37 = vld [vmem:[#allocation5] sm:$0xff]
    %vm38 = vcmask 261120
    %v40 = vsel %vm38, %v36, 0
    %v43 = vsel %vm38, %v37, 0
    %45 = vmatprep.subr.mxu0 0.0
    %46 = vmatpush1.xpose.msra.mxu0 %v43
    %47 = vmatprep.subr.mxu0 0.0
    %48 = vmatpush1.xpose.msra.mxu0 0.0
    %49 = vmatprep.subr.mxu0 0.0
    %50 = vmatpush1.xpose.msra.mxu0 0.0
    %51 = vmatprep.subr.mxu0 0.0
    %52 = vmatpush1.xpose.msra.mxu0 0.0
    %53 = vmatprep.subr.mxu0 0.0
    %54 = vmatpush1.xpose.msra.mxu0 0.0
    %55 = vmatprep.subr.mxu0 0.0
    %56 = vmatpush1.xpose.msra.mxu0 0.0
    %57 = vmatprep.subr.mxu0 0.0
    %58 = vmatpush1.xpose.msra.mxu0 0.0
    %59 = vmatprep.subr.mxu0 0.0
    %60 = vmatpush1.xpose.msra.mxu0 0.0
    %61 = vmatprep.subr.mxu0 0.0
    %62 = vmatpush1.xpose.msra.mxu0 0.0
    %63 = vmatprep.subr.mxu0 0.0
    %64 = vmatpush1.xpose.msra.mxu0 0.0
    %65 = vmatprep.subr.mxu0 0.0
    %66 = vmatpush1.xpose.msra.mxu0 0.0
    %67 = vmatprep.subr.mxu0 0.0
    %68 = vmatpush1.xpose.msra.mxu0 0.0
    %69 = vmatprep.subr.mxu0 0.0
    %70 = vmatpush1.xpose.msra.mxu0 0.0
    %71 = vmatprep.subr.mxu0 0.0
    %72 = vmatpush1.xpose.msra.mxu0 0.0
    %73 = vmatprep.subr.mxu0 0.0
    %74 = vmatpush1.xpose.msra.mxu0 0.0
    %75 = vmatprep.subr.mxu0 0.0
    %76 = vmatpush1.xpose.msra.mxu0 0.0
    %77 = vmatprep.subr.mxu0 0.0
    %78 = vmatpush1.xpose.msra.mxu0 0.0
    %79 = vmatprep.subr.mxu0 0.0
    %80 = vmatpush1.xpose.msra.mxu0 0.0
    %81 = vmatprep.subr.mxu0 0.0
    %82 = vmatpush1.xpose.msra.mxu0 0.0
    %83 = vmatprep.subr.mxu0 0.0
    %84 = vmatpush1.xpose.msra.mxu0 0.0
    %85 = vmatprep.subr.mxu0 0.0
    %86 = vmatpush1.xpose.msra.mxu0 0.0
    %87 = vmatprep.subr.mxu0 0.0
    %88 = vmatpush1.xpose.msra.mxu0 0.0
    %89 = vmatprep.subr.mxu0 0.0
    %90 = vmatpush1.xpose.msra.mxu0 0.0
    %91 = vmatprep.subr.mxu0 0.0
    %92 = vmatpush1.xpose.msra.mxu0 0.0
    %93 = vmatprep.subr.mxu0 0.0
    %94 = vmatpush1.xpose.msra.mxu0 0.0
    %95 = vmatprep.subr.mxu0 0.0
    %96 = vmatpush1.xpose.msra.mxu0 0.0
    %97 = vmatprep.subr.mxu0 0.0
    %98 = vmatpush1.xpose.msra.mxu0 0.0
    %99 = vmatprep.subr.mxu0 0.0
    %100 = vmatpush1.xpose.msra.mxu0 0.0
    %101 = vmatprep.subr.mxu0 0.0
    %102 = vmatpush1.xpose.msra.mxu0 0.0
    %103 = vmatprep.subr.mxu0 0.0
    %104 = vmatpush1.xpose.msra.mxu0 0.0
    %105 = vmatprep.subr.mxu0 0.0
    %106 = vmatpush1.xpose.msra.mxu0 0.0
    %107 = vmatprep.subr.mxu0 0.0
    %108 = vmatpush1.xpose.msra.mxu0 0.0
    %109 = vmatprep.mubr.f32.mxu0 0.0
    %110 = vmatmul.mubr.f32.gmra.mrb[0].mxu0 %v40
    %v111 = vpop.f32.mrb[0].mxu0
    %v112 = vadd.f32 0.0, %v111
    %v113 = vpop.f32.mrb[0].mxu0
    %114 = vdwg.mxu0
    %v115 = vmul.f32 %v36, %v36
    %v116 = vsel %vm38, %v115, 0.0
    %117 = vadd.xlane.f32.xlu0 %v116
    %v118 = vpop.xlane.xlu0 %117
    %v119 = vmul.f32 %v37, %v37
    %v121 = vsel %vm38, 1.0, 0
    %v124 = vsel %vm38, %v119, 0
    %126 = vmatprep.subr.mxu0 0.0
    %127 = vmatpush1.xpose.msra.mxu0 %v124
    %128 = vmatprep.subr.mxu0 0.0
    %129 = vmatpush1.xpose.msra.mxu0 0.0
    %130 = vmatprep.subr.mxu0 0.0
    %131 = vmatpush1.xpose.msra.mxu0 0.0
    %132 = vmatprep.subr.mxu0 0.0
    %133 = vmatpush1.xpose.msra.mxu0 0.0
    %134 = vmatprep.subr.mxu0 0.0
    %135 = vmatpush1.xpose.msra.mxu0 0.0
    %136 = vmatprep.subr.mxu0 0.0
    %137 = vmatpush1.xpose.msra.mxu0 0.0
    %138 = vmatprep.subr.mxu0 0.0
    %139 = vmatpush1.xpose.msra.mxu0 0.0
    %140 = vmatprep.subr.mxu0 0.0
    %141 = vmatpush1.xpose.msra.mxu0 0.0
    %142 = vmatprep.subr.mxu0 0.0
    %143 = vmatpush1.xpose.msra.mxu0 0.0
    %144 = vmatprep.subr.mxu0 0.0
    %145 = vmatpush1.xpose.msra.mxu0 0.0
    %146 = vmatprep.subr.mxu0 0.0
    %147 = vmatpush1.xpose.msra.mxu0 0.0
    %148 = vmatprep.subr.mxu0 0.0
    %149 = vmatpush1.xpose.msra.mxu0 0.0
    %150 = vmatprep.subr.mxu0 0.0
    %151 = vmatpush1.xpose.msra.mxu0 0.0
    %152 = vmatprep.subr.mxu0 0.0
    %153 = vmatpush1.xpose.msra.mxu0 0.0
    %154 = vmatprep.subr.mxu0 0.0
    %155 = vmatpush1.xpose.msra.mxu0 0.0
    %156 = vmatprep.subr.mxu0 0.0
    %157 = vmatpush1.xpose.msra.mxu0 0.0
    %158 = vmatprep.subr.mxu0 0.0
    %159 = vmatpush1.xpose.msra.mxu0 0.0
    %160 = vmatprep.subr.mxu0 0.0
    %161 = vmatpush1.xpose.msra.mxu0 0.0
    %162 = vmatprep.subr.mxu0 0.0
    %163 = vmatpush1.xpose.msra.mxu0 0.0
    %164 = vmatprep.subr.mxu0 0.0
    %165 = vmatpush1.xpose.msra.mxu0 0.0
    %166 = vmatprep.subr.mxu0 0.0
    %167 = vmatpush1.xpose.msra.mxu0 0.0
    %168 = vmatprep.subr.mxu0 0.0
    %169 = vmatpush1.xpose.msra.mxu0 0.0
    %170 = vmatprep.subr.mxu0 0.0
    %171 = vmatpush1.xpose.msra.mxu0 0.0
    %172 = vmatprep.subr.mxu0 0.0
    %173 = vmatpush1.xpose.msra.mxu0 0.0
    %174 = vmatprep.subr.mxu0 0.0
    %175 = vmatpush1.xpose.msra.mxu0 0.0
    %176 = vmatprep.subr.mxu0 0.0
    %177 = vmatpush1.xpose.msra.mxu0 0.0
    %178 = vmatprep.subr.mxu0 0.0
    %179 = vmatpush1.xpose.msra.mxu0 0.0
    %180 = vmatprep.subr.mxu0 0.0
    %181 = vmatpush1.xpose.msra.mxu0 0.0
    %182 = vmatprep.subr.mxu0 0.0
    %183 = vmatpush1.xpose.msra.mxu0 0.0
    %184 = vmatprep.subr.mxu0 0.0
    %185 = vmatpush1.xpose.msra.mxu0 0.0
    %186 = vmatprep.subr.mxu0 0.0
    %187 = vmatpush1.xpose.msra.mxu0 0.0
    %188 = vmatprep.subr.mxu0 0.0
    %189 = vmatpush1.xpose.msra.mxu0 0.0
    %190 = vmatprep.mubr.f32.mxu0 0.0
    %191 = vmatmul.mubr.f32.gmra.mrb[0].mxu0 %v121
    %v192 = vpop.f32.mrb[0].mxu0
    %v193 = vadd.f32 0.0, %v192
    %v194 = vpop.f32.mrb[0].mxu0
    %195 = vdwg.mxu0
    %v196 = vlaneseq
    %v197 = vshrl.u32 %v196, 7
    %v198 = vsub.s32 0, %v197
    %v199 = vrot.slane %v193, %v198
    %v200 = vmul.f32 %v118, %v199
    %v201 = vmax.f32 %v200, 1e-16
    %v202 = vrsqrt.pop %v201
    %v203 = vmul.f32 %v112, %v202
    %v204 = vmul.f32 %v203, 20.0
    %vm205 = vcmask 64512
    %206 = vst.msk [vmem:[#allocation7] sm:$0xff] %vm205, %v204
    // Predicated region
    $region18: #{tpu_custom_call.1} parent=1 // pred_check
      _
    $region19: #{tpu_custom_call.1} parent=1 // pred_check_branch
      %208 = sbr.rel (0) target = $region21
    $region20: #{tpu_custom_call.1} parent=1 // pred_region
      %s210 = ssub.s32 128, 128
      %211 = vsyncadd [#allocation4], %s210
      %s213 = sshll.u32 [#allocation7], 4
      %s214 = int_to_ptr.vmem [resolvable:$true] %s213
      %216 = dma.vmem_to_hbm [thread:$0]  %s214, 128, %s2, [#allocation4]
    $region21: #{tpu_custom_call.1} parent=1 // pred_fallthru
      _
    // Predicated region
    $region22: #{tpu_custom_call.1} parent=1 // pred_check
      _
    $region23: #{tpu_custom_call.1} parent=1 // pred_check_branch
      %218 = sbr.rel (0) target = $region25
    $region24: #{tpu_custom_call.1} parent=1 // pred_region
      %219 = dma.done [#allocation4], 128
    $region25: #{tpu_custom_call.1} parent=1 // pred_fallthru
      _
    %220 = vsyncpa [#allocation3], 1
    %221 = vsyncpa [#allocation6], 1
    %222 = vsyncpa [#allocation4], 1

</llo_original>
